<compile_context>
chip_gen: v7x
topology: tpu7x:2x2x1
jax: 0.10.0
libtpu: 0.0.40
codegen_flags: <defaults>
</compile_context>

<pallas_src>
import jax
import jax.numpy as jnp
from jax.experimental import pallas as pl
from jax.experimental.pallas import tpu as pltpu

EPS = 1e-5

_LANE = 128       # vreg lane width
_SUBLANE = 8      # f32 sublane packing
_SLAB_COPIES = 6  # 2x input dbuf + 2x output dbuf + ~2 live f32 temps (conservative)


def _round_up(x, m):
    return ((x + m - 1) // m) * m


def _vmem_capacity_bytes():
    """Physical VMEM of the current TPU generation (conservative fallback)."""
    try:
        cap = getattr(pltpu.get_tpu_info(), "vmem_capacity_bytes", None)
        if cap:
            return int(cap)
    except Exception:
        pass
    return 64 * 1024 * 1024   # v7x-sized fallback: safe on every generation


def _vmem_budgets():
    cap = _vmem_capacity_bytes()
    vmem_limit = min((cap * 3) // 4, 100 * 1024 * 1024)   # ~96 MiB v5e/v6e, 48 MiB v7x
    block_budget = cap // 4                               # ~32 MiB v5e/v6e, 16 MiB v7x
    return vmem_limit, block_budget


def _choose_tb(B, per_sample_bytes, block_budget):
    """Samples per grid step, sized against padded-VMEM bytes; keep >= 2 grid
    steps when B >= 2 so both v7x TensorCores get work."""
    tb = max(1, block_budget // max(per_sample_bytes, 1))
    tb = min(tb, B)
    if B >= 2:
        tb = min(tb, pl.cdiv(B, 2))
    return int(max(tb, 1))


def _per_sample_bytes_fl(L, F):   # [B, F, L] lane-dense layout, padded dims
    return _SLAB_COPIES * _round_up(F, _SUBLANE) * _round_up(L, _LANE) * 4


def _per_sample_bytes_lf(L, F):   # [B, L, F] natural layout, padded dims
    return _SLAB_COPIES * _round_up(L, _SUBLANE) * _round_up(F, _LANE) * 4


def _compiler_params(vmem_limit):
    return pltpu.CompilerParams(dimension_semantics=("parallel",),
                                vmem_limit_bytes=vmem_limit)


# --------------------------- kernels: F < 128 (lane-dense [B, F, L]) ----------
def _revin_norm_kernel_fl(x_ref, w_ref, b_ref, y_ref, stats_ref):
    x = x_ref[...].astype(jnp.float32)             # (TB, F, L), L on lanes
    L = x.shape[-1]
    w = w_ref[...].reshape(1, -1, 1)               # (1, F, 1)
    b = b_ref[...].reshape(1, -1, 1)

    mean = jnp.mean(x, axis=-1, keepdims=True)     # (TB, F, 1)   cross-lane reduce
    # Unbiased variance (torch.var default); two-pass form for precision.
    var = jnp.sum(jnp.square(x - mean), axis=-1, keepdims=True) / jnp.float32(L - 1)
    std = jnp.sqrt(var + jnp.float32(EPS))

    # Fold normalize + affine into per-(b, f) scale/shift: only TB*F divides;
    # the (TB, F, L) pass is one mul + one add and no diff slab is kept live.
    scale = w / std
    shift = b - mean * scale
    y_ref[...] = (x * scale + shift).astype(y_ref.dtype)

    stats_ref[:, :, 0:1] = mean                    # tiny (TB, F, 2) block
    stats_ref[:, :, 1:2] = std


def _revin_denorm_kernel_fl(x_ref, w_ref, b_ref, stats_ref, y_ref):
    x = x_ref[...].astype(jnp.float32)             # (TB, F, L)
    w = w_ref[...].reshape(1, -1, 1)
    b = b_ref[...].reshape(1, -1, 1)
    mean = stats_ref[:, :, 0:1]                    # (TB, F, 1)
    std = stats_ref[:, :, 1:2]

    # (x - b) / w * std + mean == x*(std/w) + (mean - b*(std/w)); raw division
    # by the affine weight, exactly as the reference module does.
    scale = std / w
    shift = mean - b * scale
    y_ref[...] = (x * scale + shift).astype(y_ref.dtype)


# --------------------------- kernels: F >= 128 (natural [B, L, F]) ------------
def _revin_norm_kernel_lf(x_ref, w_ref, b_ref, y_ref, stats_ref):
    x = x_ref[...].astype(jnp.float32)             # (TB, L, F), F on lanes
    L = x.shape[1]
    w = w_ref[...].reshape(1, 1, -1)               # (1, 1, F)
    b = b_ref[...].reshape(1, 1, -1)

    mean = jnp.mean(x, axis=1, keepdims=True)      # (TB, 1, F)
    var = jnp.sum(jnp.square(x - mean), axis=1, keepdims=True) / jnp.float32(L - 1)
    std = jnp.sqrt(var + jnp.float32(EPS))

    scale = w / std
    shift = b - mean * scale
    y_ref[...] = (x * scale + shift).astype(y_ref.dtype)

    stats_ref[:, 0:1, :] = mean                    # tiny (TB, 2, F) block
    stats_ref[:, 1:2, :] = std


def _revin_denorm_kernel_lf(x_ref, w_ref, b_ref, stats_ref, y_ref):
    x = x_ref[...].astype(jnp.float32)
    w = w_ref[...].reshape(1, 1, -1)
    b = b_ref[...].reshape(1, 1, -1)
    mean = stats_ref[:, 0:1, :]
    std = stats_ref[:, 1:2, :]
    scale = std / w
    shift = mean - b * scale
    y_ref[...] = (x * scale + shift).astype(y_ref.dtype)


# --------------------------- wrappers ------------------------------------------
def revin_norm(x, weight, bias):
    """x: [B, L, F]; weight/bias: [F].  Returns (y, stats); `stats` is the packed
    per-instance (mean, std) array consumed directly by revin_denorm."""
    B, L, F = x.shape
    if L < 2:
        raise ValueError("RevIN norm needs Length >= 2 (unbiased variance uses L-1).")
    vmem_limit, budget = _vmem_budgets()

    if F < _LANE:
        # Lane-dense path: run on a [B, F, L] view so L sits on the lane axis.
        xt = jnp.transpose(x, (0, 2, 1))
        w2 = weight.reshape(F, 1).astype(jnp.float32)
        b2 = bias.reshape(F, 1).astype(jnp.float32)
        TB = _choose_tb(B, _per_sample_bytes_fl(L, F), budget)
        yt, stats = pl.pallas_call(
            _revin_norm_kernel_fl,
            grid=(pl.cdiv(B, TB),),
            in_specs=[
                pl.BlockSpec((TB, F, L), lambda i: (i, 0, 0)),
                pl.BlockSpec((F, 1), lambda i: (0, 0)),
                pl.BlockSpec((F, 1), lambda i: (0, 0)),
            ],
            out_specs=[
                pl.BlockSpec((TB, F, L), lambda i: (i, 0, 0)),
                pl.BlockSpec((TB, F, 2), lambda i: (i, 0, 0)),
            ],
            out_shape=[
                jax.ShapeDtypeStruct((B, F, L), x.dtype),
                jax.ShapeDtypeStruct((B, F, 2), jnp.float32),
            ],
            compiler_params=_compiler_params(vmem_limit),
        )(xt, w2, b2)
        return jnp.transpose(yt, (0, 2, 1)), stats

    # Natural path: F already lane-dense, no transposes.
    w2 = weight.reshape(1, F).astype(jnp.float32)
    b2 = bias.reshape(1, F).astype(jnp.float32)
    TB = _choose_tb(B, _per_sample_bytes_lf(L, F), budget)
    y, stats = pl.pallas_call(
        _revin_norm_kernel_lf,
        grid=(pl.cdiv(B, TB),),
        in_specs=[
            pl.BlockSpec((TB, L, F), lambda i: (i, 0, 0)),
            pl.BlockSpec((1, F), lambda i: (0, 0)),
            pl.BlockSpec((1, F), lambda i: (0, 0)),
        ],
        out_specs=[
            pl.BlockSpec((TB, L, F), lambda i: (i, 0, 0)),
            pl.BlockSpec((TB, 2, F), lambda i: (i, 0, 0)),
        ],
        out_shape=[
            jax.ShapeDtypeStruct((B, L, F), x.dtype),
            jax.ShapeDtypeStruct((B, 2, F), jnp.float32),
        ],
        compiler_params=_compiler_params(vmem_limit),
    )(x, w2, b2)
    return y, stats


def revin_denorm(x, weight, bias, stats):
    """Inverse transform.  `stats` is the packed array returned by revin_norm."""
    B, L, F = x.shape
    vmem_limit, budget = _vmem_budgets()

    if F < _LANE:
        xt = jnp.transpose(x, (0, 2, 1))
        w2 = weight.reshape(F, 1).astype(jnp.float32)
        b2 = bias.reshape(F, 1).astype(jnp.float32)
        TB = _choose_tb(B, _per_sample_bytes_fl(L, F), budget)
        yt = pl.pallas_call(
            _revin_denorm_kernel_fl,
            grid=(pl.cdiv(B, TB),),
            in_specs=[
                pl.BlockSpec((TB, F, L), lambda i: (i, 0, 0)),
                pl.BlockSpec((F, 1), lambda i: (0, 0)),
                pl.BlockSpec((F, 1), lambda i: (0, 0)),
                pl.BlockSpec((TB, F, 2), lambda i: (i, 0, 0)),
            ],
            out_specs=pl.BlockSpec((TB, F, L), lambda i: (i, 0, 0)),
            out_shape=jax.ShapeDtypeStruct((B, F, L), x.dtype),
            compiler_params=_compiler_params(vmem_limit),
        )(xt, w2, b2, stats)
        return jnp.transpose(yt, (0, 2, 1))

    w2 = weight.reshape(1, F).astype(jnp.float32)
    b2 = bias.reshape(1, F).astype(jnp.float32)
    TB = _choose_tb(B, _per_sample_bytes_lf(L, F), budget)
    return pl.pallas_call(
        _revin_denorm_kernel_lf,
        grid=(pl.cdiv(B, TB),),
        in_specs=[
            pl.BlockSpec((TB, L, F), lambda i: (i, 0, 0)),
            pl.BlockSpec((1, F), lambda i: (0, 0)),
            pl.BlockSpec((1, F), lambda i: (0, 0)),
            pl.BlockSpec((TB, 2, F), lambda i: (i, 0, 0)),
        ],
        out_specs=pl.BlockSpec((TB, L, F), lambda i: (i, 0, 0)),
        out_shape=jax.ShapeDtypeStruct((B, L, F), x.dtype),
        compiler_params=_compiler_params(vmem_limit),
    )(x, w2, b2, stats)


def revin_stats_to_mean_std(stats, num_features):
    """Unpack stats into ([B,1,F] mean, [B,1,F] std) — interop/tests only;
    revin_denorm consumes the packed array directly."""
    if num_features < _LANE:          # lane-dense path stores stats as (B, F, 2)
        mean = stats[:, :, 0][:, None, :]
        std = stats[:, :, 1][:, None, :]
    else:                             # natural path stores stats as (B, 2, F)
        mean = stats[:, 0:1, :]
        std = stats[:, 1:2, :]
    return mean, std


# --------------------------- pure-JAX reference (mirrors the PyTorch forward) ---
def revin_ref_norm(x, weight, bias):
    mean = jnp.mean(x, axis=1, keepdims=True)
    var = jnp.var(x, axis=1, keepdims=True, ddof=1)   # torch.var default: unbiased
    std = jnp.sqrt(var + EPS)
    y = (x - mean) / std
    y = y * weight + bias
    return y, mean, std


def revin_ref_denorm(x, weight, bias, mean, std):
    x = (x - bias) / weight
    return x * std + mean


def _check(B, L, F, key):
    kx, kw, kb = jax.random.split(key, 3)
    x = jax.random.normal(kx, (B, L, F), dtype=jnp.float32)
    w = 1.0 + 0.1 * jax.random.normal(kw, (F,), dtype=jnp.float32)
    b = 0.1 * jax.random.normal(kb, (F,), dtype=jnp.float32)

    y, stats = revin_norm(x, w, b)
    jax.block_until_ready(y)
    y_ref, mean_ref, std_ref = revin_ref_norm(x, w, b)
    mean, std = revin_stats_to_mean_std(stats, F)
    assert jnp.allclose(y, y_ref, atol=1e-5, rtol=1e-5), f"norm mismatch {(B, L, F)}"
    assert jnp.allclose(mean, mean_ref, atol=1e-6, rtol=1e-6), f"mean mismatch {(B, L, F)}"
    assert jnp.allclose(std, std_ref, atol=1e-6, rtol=1e-6), f"std mismatch {(B, L, F)}"

    x_rec = revin_denorm(y, w, b, stats)
    jax.block_until_ready(x_rec)
    x_rec_ref = revin_ref_denorm(y_ref, w, b, mean_ref, std_ref)
    assert jnp.allclose(x_rec, x_rec_ref, atol=1e-5, rtol=1e-5), f"denorm mismatch {(B, L, F)}"
    assert jnp.allclose(x_rec, x, atol=1e-4, rtol=1e-4), f"roundtrip mismatch {(B, L, F)}"


if __name__ == "__main__":
    key = jax.random.PRNGKey(0)
    k1, k2, k3, k4 = jax.random.split(key, 4)

    _check(B=2, L=16, F=8, key=k1)     # small-F lane-dense path, TB=1, grid=2
    _check(B=8, L=64, F=8, key=k2)     # TB > 1 batching, grid >= 2
    _check(B=5, L=32, F=8, key=k3)     # B not divisible by TB: cdiv grid + partial block
    _check(B=2, L=16, F=256, key=k4)   # F >= 128: natural-layout path

    print("KERNEL_OK")
</pallas_src>

<mosaic_0001>
module attributes {stable_mosaic.version = 11 : i64} {
  func.func @_revin_norm_kernel_fl(%arg0: i32, %arg1: memref<1x8x16xf32, #tpu.memory_space<vmem>>, %arg2: memref<8x1xf32, #tpu.memory_space<vmem>>, %arg3: memref<8x1xf32, #tpu.memory_space<vmem>>, %arg4: memref<1x8x16xf32, #tpu.memory_space<vmem>>, %arg5: memref<1x8x2xf32, #tpu.memory_space<vmem>>) attributes {dimension_semantics = [#tpu.dimension_semantics<parallel>], iteration_bounds = array<i64: 2>, scalar_prefetch = 0 : i64, scratch_operands = 0 : i64, tpu.core_type = #tpu.core_type<tc>, window_params = [{transform_indices = @transform_0, window_bounds = array<i64: 1, 8, 16>}, {pipeline_mode = #tpu.pipeline_mode<synchronous>, transform_indices = @transform_1, window_bounds = array<i64: 8, 1>}, {pipeline_mode = #tpu.pipeline_mode<synchronous>, transform_indices = @transform_2, window_bounds = array<i64: 8, 1>}, {transform_indices = @transform_3, window_bounds = array<i64: 1, 8, 16>}, {transform_indices = @transform_4, window_bounds = array<i64: 1, 8, 2>}]} {
    %c0 = arith.constant 0 : index
    %c0_0 = arith.constant 0 : index
    %c0_1 = arith.constant 0 : index
    %0 = vector.load %arg1[%c0, %c0_0, %c0_1] : memref<1x8x16xf32, #tpu.memory_space<vmem>>, vector<1x8x16xf32>
    %c0_2 = arith.constant 0 : index
    %c0_3 = arith.constant 0 : index
    %1 = vector.load %arg2[%c0_2, %c0_3] : memref<8x1xf32, #tpu.memory_space<vmem>>, vector<8x1xf32>
    %2 = vector.shape_cast %1 : vector<8x1xf32> to vector<1x8x1xf32>
    %c0_4 = arith.constant 0 : index
    %c0_5 = arith.constant 0 : index
    %3 = vector.load %arg3[%c0_4, %c0_5] : memref<8x1xf32, #tpu.memory_space<vmem>>, vector<8x1xf32>
    %4 = vector.shape_cast %3 : vector<8x1xf32> to vector<1x8x1xf32>
    %cst = arith.constant dense<0.000000e+00> : vector<1x8xf32>
    %5 = vector.multi_reduction <add>, %0, %cst [2] : vector<1x8x16xf32> to vector<1x8xf32>
    %6 = vector.shape_cast %5 : vector<1x8xf32> to vector<1x8x1xf32>
    %cst_6 = arith.constant 1.600000e+01 : f32
    %7 = vector.broadcast %cst_6 : f32 to vector<1x8x1xf32>
    %8 = arith.divf %6, %7 : vector<1x8x1xf32>
    %9 = vector.broadcast %8 : vector<1x8x1xf32> to vector<1x8x16xf32>
    %10 = arith.subf %0, %9 : vector<1x8x16xf32>
    %11 = arith.mulf %10, %10 : vector<1x8x16xf32>
    %cst_7 = arith.constant dense<0.000000e+00> : vector<1x8xf32>
    %12 = vector.multi_reduction <add>, %11, %cst_7 [2] : vector<1x8x16xf32> to vector<1x8xf32>
    %13 = vector.shape_cast %12 : vector<1x8xf32> to vector<1x8x1xf32>
    %cst_8 = arith.constant 1.500000e+01 : f32
    %14 = vector.broadcast %cst_8 : f32 to vector<1x8x1xf32>
    %15 = arith.divf %13, %14 : vector<1x8x1xf32>
    %cst_9 = arith.constant 9.99999974E-6 : f32
    %16 = vector.broadcast %cst_9 : f32 to vector<1x8x1xf32>
    %17 = arith.addf %15, %16 : vector<1x8x1xf32>
    %18 = math.sqrt %17 : vector<1x8x1xf32>
    %19 = arith.divf %2, %18 : vector<1x8x1xf32>
    %20 = arith.mulf %8, %19 : vector<1x8x1xf32>
    %21 = arith.subf %4, %20 : vector<1x8x1xf32>
    %22 = vector.broadcast %19 : vector<1x8x1xf32> to vector<1x8x16xf32>
    %23 = arith.mulf %0, %22 : vector<1x8x16xf32>
    %24 = vector.broadcast %21 : vector<1x8x1xf32> to vector<1x8x16xf32>
    %25 = arith.addf %23, %24 : vector<1x8x16xf32>
    %c0_10 = arith.constant 0 : index
    %c0_11 = arith.constant 0 : index
    %c0_12 = arith.constant 0 : index
    %26 = vector.load %arg4[%c0_10, %c0_11, %c0_12] : memref<1x8x16xf32, #tpu.memory_space<vmem>>, vector<1x8x16xf32>
    tpu.vector_store %arg4[%c0_10, %c0_11, %c0_12], %25 {strides = array<i32>} : memref<1x8x16xf32, #tpu.memory_space<vmem>>, vector<1x8x16xf32>,
    %c0_13 = arith.constant 0 : index
    %c0_14 = arith.constant 0 : index
    %c0_15 = arith.constant 0 : index
    %27 = vector.load %arg5[%c0_13, %c0_14, %c0_15] : memref<1x8x2xf32, #tpu.memory_space<vmem>>, vector<1x8x1xf32>
    tpu.vector_store %arg5[%c0_13, %c0_14, %c0_15], %8 {strides = array<i32>} : memref<1x8x2xf32, #tpu.memory_space<vmem>>, vector<1x8x1xf32>,
    %c0_16 = arith.constant 0 : index
    %c0_17 = arith.constant 0 : index
    %c1 = arith.constant 1 : index
    %28 = vector.load %arg5[%c0_16, %c0_17, %c1] : memref<1x8x2xf32, #tpu.memory_space<vmem>>, vector<1x8x1xf32>
    tpu.vector_store %arg5[%c0_16, %c0_17, %c1], %18 {strides = array<i32>} : memref<1x8x2xf32, #tpu.memory_space<vmem>>, vector<1x8x1xf32>,
    return
  }
  func.func @transform_0(%arg0: i32) -> (i32, i32, i32) {
    %c0_i32 = arith.constant 0 : i32
    %c0_i32_0 = arith.constant 0 : i32
    %c0_i32_1 = arith.constant 0 : i32
    return %arg0, %c0_i32, %c0_i32_0 : i32, i32, i32
  }
  func.func @transform_1(%arg0: i32) -> (i32, i32) {
    %c0_i32 = arith.constant 0 : i32
    %c0_i32_0 = arith.constant 0 : i32
    %c0_i32_1 = arith.constant 0 : i32
    return %c0_i32, %c0_i32_0 : i32, i32
  }
  func.func @transform_2(%arg0: i32) -> (i32, i32) {
    %c0_i32 = arith.constant 0 : i32
    %c0_i32_0 = arith.constant 0 : i32
    %c0_i32_1 = arith.constant 0 : i32
    return %c0_i32, %c0_i32_0 : i32, i32
  }
  func.func @transform_3(%arg0: i32) -> (i32, i32, i32) {
    %c0_i32 = arith.constant 0 : i32
    %c0_i32_0 = arith.constant 0 : i32
    %c0_i32_1 = arith.constant 0 : i32
    return %arg0, %c0_i32, %c0_i32_0 : i32, i32, i32
  }
  func.func @transform_4(%arg0: i32) -> (i32, i32, i32) {
    %c0_i32 = arith.constant 0 : i32
    %c0_i32_0 = arith.constant 0 : i32
    %c0_i32_1 = arith.constant 0 : i32
    return %arg0, %c0_i32, %c0_i32_0 : i32, i32, i32
  }
}

</mosaic_0001>

<llo_original>
// kernel: tpu_custom_call.1
$region0: #{tpu_custom_call.1}
  #allocation0 [shape = 'u32[]', space=smem, size = 0x4, offset = 0x4, fixed_abs, tag = 'smem constant byte address 0x4 - core index']
  #allocation1 [shape = 'u32[144,128]{1,0:T(1,128)}', space=vmem, size = 0x12000, scoped, tag = 'internal scratch']
  %s0 = inlined_call_operand.vmem [shape: f32[2,8,16], index: 0, kind: input, shape index: {}]
  %s1 = inlined_call_operand.vmem [shape: f32[8,1], index: 1, kind: input, shape index: {}]
  %s2 = inlined_call_operand.vmem [shape: f32[8,1], index: 2, kind: input, shape index: {}]
  %s3 = inlined_call_operand.hbm [shape: f32[2,8,16], index: 3, kind: output, shape index: {0}]
  %s4 = inlined_call_operand.vmem [shape: f32[2,8,2], index: 4, kind: output, shape index: {1}]
  %5 = xla_tuple %s3, %s4
  %s6 = sld [smem:[#allocation0]]
  $region53: #{tpu_custom_call.1} parent=0
    _
  %s8 = ssub.s32 1, %s6
  %s9 = scalar_select 0, %s8, %s6
  $region1: #{tpu_custom_call.1} parent=0
    #allocation2 [shape = 'u8[8192]{0}', space=vmem, size = 0x2000, scoped, tag = 'output window, operand 0']
    #allocation3 [shape = 's32[2]{0}', space=sflag, size = 0x8, scoped, tag = 'scoped memory for tpu_custom_call.1']
    %10 = vsyncpa [#allocation3], 0
    %s11 = scalar_lea.sflag [#allocation3], 1
    %12 = vsyncpa %s11, 0
    loop: start=0, step=1, limit=4
    $region2: #{tpu_custom_call.1} parent=1 // loop_pre_header
      _
    $region3: #{tpu_custom_call.1} parent=1 // loop_header
      %s14 = sphi 0, %s18
      %p15 = scmp.ge.s32.totalorder %s14, 4
      %s24 = sphi 0, %s26
      %s27 = sphi 0, %s24
      %s28 = sphi 0, %s27
      %s44 = sphi 0, %s28
      %s48 = sphi 0, %s48
      %s50 = sphi 0, %s48
      %s51 = sphi 0, %s50
      %s65 = sphi 0, %s51
      %s69 = sphi 0, %s69
      %s71 = sphi 0, %s69
      %s72 = sphi 0, %s71
      %s86 = sphi 0, %s72
      %s92 = sphi 0, %s94
      %s95 = sphi 0, %s92
      %s96 = sphi 0, %s95
      %s112 = sphi 0, %s96
      %s118 = sphi 0, %s120
      %s121 = sphi 0, %s118
      %s122 = sphi 0, %s121
      %s138 = sphi 0, %s122
    $region4: #{tpu_custom_call.1} parent=1 // loop_header_branch
      %17 = sbr.rel (%p15) target = $region8
    $region5: #{tpu_custom_call.1} parent=1 // loop_body
      %s19 = ssub.s32 %s14, 1
      %s20 = ssub.s32 %s14, 2
      %s21 = sadd.s32 %s14, 1
      %s22 = ssub.s32 %s14, %s21
      %p23 = scmp.eq.s32.totalorder %s22, 0
      %s25 = sadd.s32 %s24, 1
      %s26 = scalar_select %p23, %s24, %s25
      %p29 = pneg %p23
      %p30 = scmp.eq.s32.totalorder %s14, 1
      %p31 = por %p29, %p30
      %p32 = scmp.ne.s32.totalorder %s24, %s27
      %p33 = scmp.eq.s32.totalorder %s14, 0
      %p34 = por %p32, %p33
      %p35 = scmp.ne.s32.totalorder %s24, %s27
      %p36 = scmp.eq.s32.totalorder %s19, 1
      %p37 = por %p35, %p36
      %p38 = scmp.ne.s32.totalorder %s27, %s28
      %p39 = scmp.eq.s32.totalorder %s19, 0
      %p40 = por %p38, %p39
      %p41 = scmp.ne.s32.totalorder %s27, %s28
      %p42 = scmp.eq.s32.totalorder %s20, 1
      %p43 = por %p41, %p42
      %p45 = scmp.ne.s32.totalorder %s28, %s44
      %p46 = scmp.eq.s32.totalorder %s20, 0
      %p47 = por %p45, %p46
      %s49 = sadd.s32 %s48, 1
      %p52 = scmp.eq.s32.totalorder %s14, 1
      %p53 = scmp.ne.s32.totalorder %s48, %s50
      %p54 = scmp.eq.s32.totalorder %s14, 0
      %p55 = por %p53, %p54
      %p56 = scmp.ne.s32.totalorder %s48, %s50
      %p57 = scmp.eq.s32.totalorder %s19, 1
      %p58 = por %p56, %p57
      %p59 = scmp.ne.s32.totalorder %s50, %s51
      %p60 = scmp.eq.s32.totalorder %s19, 0
      %p61 = por %p59, %p60
      %p62 = scmp.ne.s32.totalorder %s50, %s51
      %p63 = scmp.eq.s32.totalorder %s20, 1
      %p64 = por %p62, %p63
      %p66 = scmp.ne.s32.totalorder %s51, %s65
      %p67 = scmp.eq.s32.totalorder %s20, 0
      %p68 = por %p66, %p67
      %s70 = sadd.s32 %s69, 1
      %p73 = scmp.eq.s32.totalorder %s14, 1
      %p74 = scmp.ne.s32.totalorder %s69, %s71
      %p75 = scmp.eq.s32.totalorder %s14, 0
      %p76 = por %p74, %p75
      %p77 = scmp.ne.s32.totalorder %s69, %s71
      %p78 = scmp.eq.s32.totalorder %s19, 1
      %p79 = por %p77, %p78
      %p80 = scmp.ne.s32.totalorder %s71, %s72
      %p81 = scmp.eq.s32.totalorder %s19, 0
      %p82 = por %p80, %p81
      %p83 = scmp.ne.s32.totalorder %s71, %s72
      %p84 = scmp.eq.s32.totalorder %s20, 1
      %p85 = por %p83, %p84
      %p87 = scmp.ne.s32.totalorder %s72, %s86
      %p88 = scmp.eq.s32.totalorder %s20, 0
      %p89 = por %p87, %p88
      %s90 = ssub.s32 %s14, %s21
      %p91 = scmp.eq.s32.totalorder %s90, 0
      %s93 = sadd.s32 %s92, 1
      %s94 = scalar_select %p91, %s92, %s93
      %p97 = pneg %p91
      %p98 = scmp.eq.s32.totalorder %s14, 1
      %p99 = por %p97, %p98
      %p100 = scmp.ne.s32.totalorder %s92, %s95
      %p101 = scmp.eq.s32.totalorder %s14, 0
      %p102 = por %p100, %p101
      %p103 = scmp.ne.s32.totalorder %s92, %s95
      %p104 = scmp.eq.s32.totalorder %s19, 1
      %p105 = por %p103, %p104
      %p106 = scmp.ne.s32.totalorder %s95, %s96
      %p107 = scmp.eq.s32.totalorder %s19, 0
      %p108 = por %p106, %p107
      %p109 = scmp.ne.s32.totalorder %s95, %s96
      %p110 = scmp.eq.s32.totalorder %s20, 1
      %p111 = por %p109, %p110
      %p113 = scmp.ne.s32.totalorder %s96, %s112
      %p114 = scmp.eq.s32.totalorder %s20, 0
      %p115 = por %p113, %p114
      %s116 = ssub.s32 %s14, %s21
      %p117 = scmp.eq.s32.totalorder %s116, 0
      %s119 = sadd.s32 %s118, 1
      %s120 = scalar_select %p117, %s118, %s119
      %p123 = pneg %p117
      %p124 = scmp.eq.s32.totalorder %s14, 1
      %p125 = por %p123, %p124
      %p126 = scmp.ne.s32.totalorder %s118, %s121
      %p127 = scmp.eq.s32.totalorder %s14, 0
      %p128 = por %p126, %p127
      %p129 = scmp.ne.s32.totalorder %s118, %s121
      %p130 = scmp.eq.s32.totalorder %s19, 1
      %p131 = por %p129, %p130
      %p132 = scmp.ne.s32.totalorder %s121, %s122
      %p133 = scmp.eq.s32.totalorder %s19, 0
      %p134 = por %p132, %p133
      %p135 = scmp.ne.s32.totalorder %s121, %s122
      %p136 = scmp.eq.s32.totalorder %s20, 1
      %p137 = por %p135, %p136
      %p139 = scmp.ne.s32.totalorder %s122, %s138
      %p140 = scmp.eq.s32.totalorder %s20, 0
      %p141 = por %p139, %p140
      %p142 = scmp.le.s32.totalorder 1, %s14
      %p143 = scmp.lt.s32.totalorder %s14, 3
      %p144 = pnand %p142, %p143
      %p145 = pneg %p144
      // Predicated region
      $region9: #{tpu_custom_call.1} parent=5 // pred_check
        _
      $region10: #{tpu_custom_call.1} parent=5 // pred_check_branch
        %147 = sbr.rel (%p144) target = $region12
      $region11: #{tpu_custom_call.1} parent=5 // pred_region
        %s148 = ssub.s32 %s14, 1
        // Predicated region
        $region13: #{tpu_custom_call.1} parent=11 // pred_check
          %p149 = pneg %p61
        $region14: #{tpu_custom_call.1} parent=11 // pred_check_branch
          %151 = sbr.rel (%p149) target = $region16
        $region15: #{tpu_custom_call.1} parent=11 // pred_region
          _
        $region16: #{tpu_custom_call.1} parent=11 // pred_fallthru
          _
        // Predicated region
        $region17: #{tpu_custom_call.1} parent=11 // pred_check
          %p152 = pneg %p82
        $region18: #{tpu_custom_call.1} parent=11 // pred_check_branch
          %154 = sbr.rel (%p152) target = $region20
        $region19: #{tpu_custom_call.1} parent=11 // pred_region
          _
        $region20: #{tpu_custom_call.1} parent=11 // pred_fallthru
          _
      $region12: #{tpu_custom_call.1} parent=5 // pred_fallthru
        _
      %p155 = scmp.lt.s32.totalorder %s14, 2
      // Predicated region
      $region21: #{tpu_custom_call.1} parent=5 // pred_check
        %p156 = pneg %p155
      $region22: #{tpu_custom_call.1} parent=5 // pred_check_branch
        %158 = sbr.rel (%p156) target = $region24
      $region23: #{tpu_custom_call.1} parent=5 // pred_region
        // Predicated region
        $region25: #{tpu_custom_call.1} parent=23 // pred_check
          %p159 = pneg %p34
        $region26: #{tpu_custom_call.1} parent=23 // pred_check_branch
          %161 = sbr.rel (%p159) target = $region28
        $region27: #{tpu_custom_call.1} parent=23 // pred_region
          %p162 = scmp.lt.s32.totalorder %s14, 1
          %s163 = scalar_select %p162, %s14, 1
          %s164 = smul.addr %s163, 8
          %s165 = scalar_lea.vmem %s0, %s164
        $region28: #{tpu_custom_call.1} parent=23 // pred_fallthru
          _
      $region24: #{tpu_custom_call.1} parent=5 // pred_fallthru
        _
      %p166 = scmp.le.s32.totalorder 1, %s14
      %p167 = scmp.lt.s32.totalorder %s14, 3
      %p168 = pnand %p166, %p167
      %p169 = pneg %p168
      // Predicated region
      $region29: #{tpu_custom_call.1} parent=5 // pred_check
        _
      $region30: #{tpu_custom_call.1} parent=5 // pred_check_branch
        %171 = sbr.rel (%p168) target = $region32
      $region31: #{tpu_custom_call.1} parent=5 // pred_region
        %s172 = ssub.s32 %s14, 1
        %p173 = scmp.lt.s32.totalorder %s19, 1
        %s174 = scalar_select %p173, %s19, 1
        %s175 = smul.addr %s174, 8
        %s176 = scalar_lea.vmem %s0, %s175
        %p177 = pneg %p40
        %p178 = pneg %p37
        %p179 = pneg %p61
        %p180 = pneg %p58
        %p181 = pneg %p82
        %p182 = pneg %p79
        %p183 = pneg %p108
        %p184 = pneg %p105
        %s185 = sand.u32 %s95, 1
        %s186 = scalar_lea.sflag [#allocation3], %s185
        %s187 = sand.u32 %s95, 1
        %s188 = smul.addr %s187, 8
        %s189 = scalar_lea.vmem [#allocation2], %s188
        %p190 = pneg %p134
        %p191 = pneg %p131
        %p192 = scmp.lt.s32.totalorder %s19, 1
        %s193 = scalar_select %p192, %s19, 1
        %s194 = smul.addr %s193, 8
        %s195 = scalar_lea.vmem %s4, %s194
        %p196 = scmp.lt.s32.totalorder %s19, 1
        %s197 = scalar_select %p196, %s19, 1
        %s198 = smul.addr %s197, 8
        %s199 = scalar_lea.vmem %s0, %s198
        %p200 = scmp.lt.s32.totalorder %s19, 1
        %s201 = scalar_select %p200, %s19, 1
        %s202 = smul.addr %s201, 8
        %s203 = scalar_lea.vmem %s4, %s202
        %v204 = vld [vmem:[%s199] sm:$0xff]
        %v205 = vld [vmem:[%s1] sm:$0xff]
        %v206 = vld [vmem:[%s2] sm:$0xff]
        %vm207 = vcmask 130048
        %v208 = vsel %vm207, %v204, 0.0
        %209 = vadd.xlane.f32.xlu0 %v208
        %v210 = vpop.xlane.xlu0 %209
        %v211 = vrcp.pop 16.0
        %v212 = vmul.f32 %v210, %v211
        %v213 = vsub.f32 %v204, %v212
        %v214 = vmul.f32 %v213, %v213
        %v215 = vsel %vm207, %v214, 0.0
        %216 = vadd.xlane.f32.xlu0 %v215
        %v217 = vpop.xlane.xlu0 %216
        %v218 = vrcp.pop 15.0
        %v219 = vmul.f32 %v217, %v218
        %v220 = vadd.f32 %v219, 1e-05
        %v221 = vrsqrt.pop %v220
        %v222 = vmul.f32 %v220, %v221
        %vm223 = vcmp.eq.f32.partialorder %v220, inf
        %v224 = vsel %vm223, %v220, %v222
        %vm225 = vcmp.eq.f32.partialorder %v220, 0.0
        %v226 = vand.u32 %v220, 2147483648
        %v227 = vsel %vm225, %v226, %v224
        %v228 = vrcp.pop %v227
        %v229 = vmul.f32 %v205, %v228
        %v230 = vmul.f32 %v212, %v229
        %v231 = vsub.f32 %v206, %v230
        %233 = vset.pattern.permute.xlu0 0
        %234 = vperm.xlu0 %233, %v229
        %v235 = vpop.permute.xlu0 %234
        %v237 = vmul.f32 %v204, %v235
        %239 = vset.pattern.permute.xlu0 0
        %240 = vperm.xlu0 %239, %v231
        %v241 = vpop.permute.xlu0 %240
        %v243 = vadd.f32 %v237, %v241
        %244 = vst.msk [vmem:[%s189] sm:$0xff] %vm207, %v243
        %vm245 = vcmask 7168
        %246 = vst.msk [vmem:[%s203] sm:$0xff] %vm245, %v212
        %vm247 = vcmask 15368
        %248 = vst.msk [vmem:[%s203] sm:$0xff] %vm247, %v227
        %s249 = sand.u32 %s95, 1
        %s250 = scalar_lea.sflag [#allocation3], %s249
        %s251 = sand.u32 %s95, 1
        %s252 = smul.addr %s251, 8
        %s253 = scalar_lea.vmem [#allocation2], %s252
        %p254 = scmp.lt.s32.totalorder %s19, 1
        %s255 = scalar_select %p254, %s19, 1
        %s256 = smul.addr %s255, 8
        %s257 = scalar_lea.vmem %s4, %s256
        // Predicated region
        $region33: #{tpu_custom_call.1} parent=31 // pred_check
          %p258 = pneg %p105
        $region34: #{tpu_custom_call.1} parent=31 // pred_check_branch
          %260 = sbr.rel (%p258) target = $region36
        $region35: #{tpu_custom_call.1} parent=31 // pred_region
          %s262 = ssub.s32 128, 128
          %263 = vsyncadd %s250, %s262
          %s264 = smul.addr %s19, 128
          %s265 = scalar_lea.hbm %s3, %s264
          %s267 = sshll.u32 %s253, 4
          %s268 = int_to_ptr.vmem [resolvable:$true] %s267
          %270 = dma.vmem_to_hbm [thread:$0]  %s268, 128, %s265, %s250
        $region36: #{tpu_custom_call.1} parent=31 // pred_fallthru
          _
        // Predicated region
        $region37: #{tpu_custom_call.1} parent=31 // pred_check
          %p271 = pneg %p131
        $region38: #{tpu_custom_call.1} parent=31 // pred_check_branch
          %273 = sbr.rel (%p271) target = $region40
        $region39: #{tpu_custom_call.1} parent=31 // pred_region
          _
        $region40: #{tpu_custom_call.1} parent=31 // pred_fallthru
          _
      $region32: #{tpu_custom_call.1} parent=5 // pred_fallthru
        _
      %p274 = scmp.le.s32.totalorder 2, %s14
      // Predicated region
      $region41: #{tpu_custom_call.1} parent=5 // pred_check
        %p275 = pneg %p274
      $region42: #{tpu_custom_call.1} parent=5 // pred_check_branch
        %277 = sbr.rel (%p275) target = $region44
      $region43: #{tpu_custom_call.1} parent=5 // pred_region
        %s278 = ssub.s32 %s14, 2
        // Predicated region
        $region45: #{tpu_custom_call.1} parent=43 // pred_check
          %p279 = pneg %p111
        $region46: #{tpu_custom_call.1} parent=43 // pred_check_branch
          %281 = sbr.rel (%p279) target = $region48
        $region47: #{tpu_custom_call.1} parent=43 // pred_region
          %s282 = sand.u32 %s96, 1
          %s283 = scalar_lea.sflag [#allocation3], %s282
          %s284 = sand.u32 %s96, 1
          %s285 = smul.addr %s284, 8
          %s286 = scalar_lea.vmem [#allocation2], %s285
          %287 = dma.done %s283, 128
        $region48: #{tpu_custom_call.1} parent=43 // pred_fallthru
          _
        // Predicated region
        $region49: #{tpu_custom_call.1} parent=43 // pred_check
          %p288 = pneg %p137
        $region50: #{tpu_custom_call.1} parent=43 // pred_check_branch
          %290 = sbr.rel (%p288) target = $region52
        $region51: #{tpu_custom_call.1} parent=43 // pred_region
          %p291 = scmp.lt.s32.totalorder %s20, 1
          %s292 = scalar_select %p291, %s20, 1
          %s293 = smul.addr %s292, 8
          %s294 = scalar_lea.vmem %s4, %s293
        $region52: #{tpu_custom_call.1} parent=43 // pred_fallthru
          _
      $region44: #{tpu_custom_call.1} parent=5 // pred_fallthru
        _
    $region6: #{tpu_custom_call.1} parent=1 // loop_footer
      %s18 = sadd.s32 1, %s14
    $region7: #{tpu_custom_call.1} parent=1 // loop_footer_branch
      %13 = sbr.rel target = $region3
    $region8: #{tpu_custom_call.1} parent=1 // loop_exit
      _
    %295 = vsyncpa [#allocation3], 1
    %s296 = scalar_lea.sflag [#allocation3], 1
    %297 = vsyncpa %s296, 1

</llo_original>
